<compile_context>
chip_gen: v7x
topology: tpu7x:2x2x1
jax: 0.10.0
libtpu: 0.0.40
codegen_flags: <defaults>
</compile_context>

<pallas_src>
import functools

import jax
import jax.numpy as jnp
from jax.experimental import pallas as pl
from jax.experimental.pallas import tpu as pltpu

_IN = 64    # flattened input features
_HID = 64   # fc1 output width
_OUT = 10   # fc2 output width


def _round_up(n, m):
    return (n + m - 1) // m * m


def _mlp_kernel(x_ref, w1_ref, b1_ref, w2_ref, b2_ref, o_ref):
    # x_ref : [TILE_B, 64] f32   (flattened input tile, streamed from HBM)
    # w1_ref: [64, 64]     bf16  (fc1 weight, [in, out] layout, VMEM-resident)
    # b1_ref: [1, 64]      f32
    # w2_ref: [64, 10]     bf16  (fc2 weight, [in, out] layout, VMEM-resident)
    # b2_ref: [1, 10]      f32
    # o_ref : [TILE_B, 10] f32   (true logits; no lane padding in HBM)
    x = x_ref[...].astype(jnp.bfloat16)                      # in-kernel bf16 feed
    h = jnp.dot(x, w1_ref[...], preferred_element_type=jnp.float32) + b1_ref[...]
    h = jnp.maximum(h, 0.0).astype(jnp.bfloat16)             # ReLU, bf16 MXU feed
    y = jnp.dot(h, w2_ref[...], preferred_element_type=jnp.float32) + b2_ref[...]
    o_ref[...] = y.astype(o_ref.dtype)


@functools.partial(jax.jit, static_argnames=("tile_b",))
def net_forward(x, w1, b1, w2, b2, tile_b=4096):
    """Forward of Net: flatten -> fc1(64->64) -> ReLU -> fc2(64->10).

    x  : [B, ...] with prod(trailing dims) == 64 (e.g. [B, 1, 8, 8], NCHW)
    w1 : [64, 64]  ([in, out] layout, i.e. torch fc1.weight.T)
    b1 : [64]
    w2 : [64, 10]  ([in, out] layout, i.e. torch fc2.weight.T)
    b2 : [10]
    Returns [B, 10] float32 logits.
    """
    B = x.shape[0]
    x_flat = x.reshape(B, -1).astype(jnp.float32)            # nn.Flatten()
    K = x_flat.shape[1]
    assert K == _IN and w1.shape == (_IN, _HID)
    assert w2.shape == (_HID, _OUT) and b1.shape == (_HID,) and b2.shape == (_OUT,)

    # Batch tiling: multiple of 8 sublanes, at least ~2 grid steps at large B
    # (feeds both v7x TensorCores), VMEM bounded independently of B.
    tile_b = max(8, _round_up(min(tile_b, _round_up(pl.cdiv(B, 2), 8)), 8))
    grid = (pl.cdiv(B, tile_b),)                             # no batch padding

    # Small resident operands: bf16 weights (native MXU dtype), f32 biases.
    w1_b = w1.astype(jnp.bfloat16)
    w2_b = w2.astype(jnp.bfloat16)
    b1_r = b1.astype(jnp.float32).reshape(1, _HID)
    b2_r = b2.astype(jnp.float32).reshape(1, _OUT)

    cost = pl.CostEstimate(
        flops=2 * B * (_IN * _HID + _HID * _OUT),
        transcendentals=0,
        bytes_accessed=(B * _IN * 4                           # f32 x stream in
                        + B * _OUT * 4                        # f32 logits out
                        + _IN * _HID * 2 + _HID * _OUT * 2    # resident bf16 weights
                        + (_HID + _OUT) * 4),                 # resident f32 biases
    )

    return pl.pallas_call(
        _mlp_kernel,
        out_shape=jax.ShapeDtypeStruct((B, _OUT), jnp.float32),
        grid=grid,
        in_specs=[
            pl.BlockSpec((tile_b, _IN), lambda i: (i, 0)),    # x: streamed tiles
            pl.BlockSpec((_IN, _HID), lambda i: (0, 0)),      # w1: resident
            pl.BlockSpec((1, _HID), lambda i: (0, 0)),        # b1: resident
            pl.BlockSpec((_HID, _OUT), lambda i: (0, 0)),     # w2: resident
            pl.BlockSpec((1, _OUT), lambda i: (0, 0)),        # b2: resident
        ],
        out_specs=pl.BlockSpec((tile_b, _OUT), lambda i: (i, 0)),
        compiler_params=pltpu.CompilerParams(
            dimension_semantics=("parallel",),                # batch tiles shard across TCs
            vmem_limit_bytes=32 * 1024 * 1024,                # headroom on v5e default (16 MiB)
        ),
        cost_estimate=cost,
    )(x_flat, w1_b, b1_r, w2_b, b2_r)


if __name__ == "__main__":
    key = jax.random.PRNGKey(0)
    k_x, k1, k2, k3, k4 = jax.random.split(key, 5)

    # Small NCHW input that flattens to 64 features per example: [2, 1, 8, 8].
    x = jax.random.normal(k_x, (2, 1, 8, 8), dtype=jnp.float32)

    # torch.nn.Linear-style init (uniform(-1/sqrt(in), 1/sqrt(in))),
    # stored directly in [in, out] layout (transpose of torch's [out, in]).
    lim = 1.0 / jnp.sqrt(64.0)
    w1 = jax.random.uniform(k1, (64, 64), jnp.float32, -lim, lim)
    b1 = jax.random.uniform(k2, (64,), jnp.float32, -lim, lim)
    w2 = jax.random.uniform(k3, (64, 10), jnp.float32, -lim, lim)
    b2 = jax.random.uniform(k4, (10,), jnp.float32, -lim, lim)

    out = jax.block_until_ready(net_forward(x, w1, b1, w2, b2))
    assert out.shape == (2, 10)

    # Reference using the same bf16 operand casts / f32 accumulation as the kernel.
    xf = x.reshape(x.shape[0], -1)
    h_ref = jnp.maximum(
        jnp.dot(xf.astype(jnp.bfloat16), w1.astype(jnp.bfloat16),
                preferred_element_type=jnp.float32) + b1, 0.0)
    ref = jnp.dot(h_ref.astype(jnp.bfloat16), w2.astype(jnp.bfloat16),
                  preferred_element_type=jnp.float32) + b2
    assert jnp.allclose(out, ref, atol=1e-3, rtol=1e-3)

    # Loose sanity check against the full-f32 PyTorch-equivalent math.
    # TODO(synk): if full f32 fidelity is required, drop the in-kernel bf16 casts.
    ref_f32 = jnp.maximum(xf @ w1 + b1, 0.0) @ w2 + b2
    assert jnp.allclose(out, ref_f32, atol=5e-2, rtol=5e-2)

    print("KERNEL_OK")
</pallas_src>

<mosaic_0001>
module attributes {stable_mosaic.version = 11 : i64} {
  func.func @_mlp_kernel(%arg0: i32, %arg1: memref<8x64xf32, #tpu.memory_space<vmem>>, %arg2: memref<64x64xbf16, #tpu.memory_space<vmem>>, %arg3: memref<1x64xf32, #tpu.memory_space<vmem>>, %arg4: memref<64x10xbf16, #tpu.memory_space<vmem>>, %arg5: memref<1x10xf32, #tpu.memory_space<vmem>>, %arg6: memref<8x10xf32, #tpu.memory_space<vmem>>) attributes {dimension_semantics = [#tpu.dimension_semantics<parallel>], iteration_bounds = array<i64: 1>, scalar_prefetch = 0 : i64, scratch_operands = 0 : i64, tpu.core_type = #tpu.core_type<tc>, window_params = [{transform_indices = @transform_0, window_bounds = array<i64: 8, 64>}, {pipeline_mode = #tpu.pipeline_mode<synchronous>, transform_indices = @transform_1, window_bounds = array<i64: 64, 64>}, {pipeline_mode = #tpu.pipeline_mode<synchronous>, transform_indices = @transform_2, window_bounds = array<i64: 1, 64>}, {pipeline_mode = #tpu.pipeline_mode<synchronous>, transform_indices = @transform_3, window_bounds = array<i64: 64, 10>}, {pipeline_mode = #tpu.pipeline_mode<synchronous>, transform_indices = @transform_4, window_bounds = array<i64: 1, 10>}, {transform_indices = @transform_5, window_bounds = array<i64: 8, 10>}]} {
    %c0 = arith.constant 0 : index
    %c0_0 = arith.constant 0 : index
    %0 = vector.load %arg1[%c0, %c0_0] : memref<8x64xf32, #tpu.memory_space<vmem>>, vector<8x64xf32>
    %1 = arith.truncf %0 : vector<8x64xf32> to vector<8x64xbf16>
    %c0_1 = arith.constant 0 : index
    %c0_2 = arith.constant 0 : index
    %2 = vector.load %arg2[%c0_1, %c0_2] : memref<64x64xbf16, #tpu.memory_space<vmem>>, vector<64x64xbf16>
    %cst = arith.constant dense<0.000000e+00> : vector<8x64xf32>
    %3 = tpu.matmul %1, %2, %cst {dimension_numbers = #tpu.dot_dimension_numbers<[1], [0], [0], [1], [0, 0, 1, 1], [], []>} : vector<8x64xbf16>, vector<64x64xbf16>, vector<8x64xf32> -> vector<8x64xf32>
    %c0_3 = arith.constant 0 : index
    %c0_4 = arith.constant 0 : index
    %4 = vector.load %arg3[%c0_3, %c0_4] : memref<1x64xf32, #tpu.memory_space<vmem>>, vector<1x64xf32>
    %5 = vector.broadcast %4 : vector<1x64xf32> to vector<8x64xf32>
    %6 = arith.addf %3, %5 : vector<8x64xf32>
    %cst_5 = arith.constant 0.000000e+00 : f32
    %7 = vector.broadcast %cst_5 : f32 to vector<8x64xf32>
    %8 = arith.maximumf %6, %7 : vector<8x64xf32>
    %9 = arith.truncf %8 : vector<8x64xf32> to vector<8x64xbf16>
    %c0_6 = arith.constant 0 : index
    %c0_7 = arith.constant 0 : index
    %10 = vector.load %arg4[%c0_6, %c0_7] : memref<64x10xbf16, #tpu.memory_space<vmem>>, vector<64x10xbf16>
    %cst_8 = arith.constant dense<0.000000e+00> : vector<8x10xf32>
    %11 = tpu.matmul %9, %10, %cst_8 {dimension_numbers = #tpu.dot_dimension_numbers<[1], [0], [0], [1], [0, 0, 1, 1], [], []>} : vector<8x64xbf16>, vector<64x10xbf16>, vector<8x10xf32> -> vector<8x10xf32>
    %c0_9 = arith.constant 0 : index
    %c0_10 = arith.constant 0 : index
    %12 = vector.load %arg5[%c0_9, %c0_10] : memref<1x10xf32, #tpu.memory_space<vmem>>, vector<1x10xf32>
    %13 = vector.broadcast %12 : vector<1x10xf32> to vector<8x10xf32>
    %14 = arith.addf %11, %13 : vector<8x10xf32>
    %c0_11 = arith.constant 0 : index
    %c0_12 = arith.constant 0 : index
    %15 = vector.load %arg6[%c0_11, %c0_12] : memref<8x10xf32, #tpu.memory_space<vmem>>, vector<8x10xf32>
    tpu.vector_store %arg6[%c0_11, %c0_12], %14 {strides = array<i32>} : memref<8x10xf32, #tpu.memory_space<vmem>>, vector<8x10xf32>,
    return
  }
  func.func @transform_0(%arg0: i32) -> (i32, i32) {
    %c0_i32 = arith.constant 0 : i32
    %c0_i32_0 = arith.constant 0 : i32
    return %arg0, %c0_i32 : i32, i32
  }
  func.func @transform_1(%arg0: i32) -> (i32, i32) {
    %c0_i32 = arith.constant 0 : i32
    %c0_i32_0 = arith.constant 0 : i32
    %c0_i32_1 = arith.constant 0 : i32
    return %c0_i32, %c0_i32_0 : i32, i32
  }
  func.func @transform_2(%arg0: i32) -> (i32, i32) {
    %c0_i32 = arith.constant 0 : i32
    %c0_i32_0 = arith.constant 0 : i32
    %c0_i32_1 = arith.constant 0 : i32
    return %c0_i32, %c0_i32_0 : i32, i32
  }
  func.func @transform_3(%arg0: i32) -> (i32, i32) {
    %c0_i32 = arith.constant 0 : i32
    %c0_i32_0 = arith.constant 0 : i32
    %c0_i32_1 = arith.constant 0 : i32
    return %c0_i32, %c0_i32_0 : i32, i32
  }
  func.func @transform_4(%arg0: i32) -> (i32, i32) {
    %c0_i32 = arith.constant 0 : i32
    %c0_i32_0 = arith.constant 0 : i32
    %c0_i32_1 = arith.constant 0 : i32
    return %c0_i32, %c0_i32_0 : i32, i32
  }
  func.func @transform_5(%arg0: i32) -> (i32, i32) {
    %c0_i32 = arith.constant 0 : i32
    %c0_i32_0 = arith.constant 0 : i32
    return %arg0, %c0_i32 : i32, i32
  }
}

</mosaic_0001>

<llo_original>
// kernel: net_forward.1
$region0: #{net_forward.1}
  #allocation0 [shape = 'u32[]', space=smem, size = 0x4, offset = 0x4, fixed_abs, tag = 'smem constant byte address 0x4 - core index']
  #allocation1 [shape = 'u32[144,128]{1,0:T(1,128)}', space=vmem, size = 0x12000, scoped, tag = 'internal scratch']
  %s0 = inlined_call_operand.vmem [shape: f32[2,64], index: 0, kind: input, shape index: {}]
  %s1 = inlined_call_operand.vmem [shape: bf16[64,64], index: 1, kind: input, shape index: {}]
  %s2 = inlined_call_operand.vmem [shape: f32[1,64], index: 2, kind: input, shape index: {}]
  %s3 = inlined_call_operand.vmem [shape: bf16[64,10], index: 3, kind: input, shape index: {}]
  %s4 = inlined_call_operand.vmem [shape: f32[1,10], index: 4, kind: input, shape index: {}]
  %s5 = inlined_call_operand.hbm [shape: f32[2,10], index: 5, kind: output, shape index: {}]
  %s6 = sld [smem:[#allocation0]]
  $region30: #{net_forward.1} parent=0
    _
  %s8 = ssub.s32 1, %s6
  %s9 = scalar_select 0, %s8, %s6
  $region1: #{net_forward.1} parent=0
    #allocation2 [shape = 'u8[4096]{0}', space=vmem, size = 0x1000, scoped, tag = 'output window, operand 0, single buffered']
    #allocation3 [shape = 's32[1]{0}', space=sflag, size = 0x4, scoped, tag = 'scoped memory for net_forward.1']
    %10 = vsyncpa [#allocation3], 0
    // Predicated region
    $region2: #{net_forward.1} parent=1 // pred_check
      _
    $region3: #{net_forward.1} parent=1 // pred_check_branch
      %12 = sbr.rel (0) target = $region5
    $region4: #{net_forward.1} parent=1 // pred_region
      _
    $region5: #{net_forward.1} parent=1 // pred_fallthru
      _
    // Predicated region
    $region6: #{net_forward.1} parent=1 // pred_check
      _
    $region7: #{net_forward.1} parent=1 // pred_check_branch
      %14 = sbr.rel (0) target = $region9
    $region8: #{net_forward.1} parent=1 // pred_region
      _
    $region9: #{net_forward.1} parent=1 // pred_fallthru
      _
    // Predicated region
    $region10: #{net_forward.1} parent=1 // pred_check
      _
    $region11: #{net_forward.1} parent=1 // pred_check_branch
      %16 = sbr.rel (0) target = $region13
    $region12: #{net_forward.1} parent=1 // pred_region
      _
    $region13: #{net_forward.1} parent=1 // pred_fallthru
      _
    // Predicated region
    $region14: #{net_forward.1} parent=1 // pred_check
      _
    $region15: #{net_forward.1} parent=1 // pred_check_branch
      %18 = sbr.rel (0) target = $region17
    $region16: #{net_forward.1} parent=1 // pred_region
      _
    $region17: #{net_forward.1} parent=1 // pred_fallthru
      _
    // Predicated region
    $region18: #{net_forward.1} parent=1 // pred_check
      _
    $region19: #{net_forward.1} parent=1 // pred_check_branch
      %20 = sbr.rel (0) target = $region21
    $region20: #{net_forward.1} parent=1 // pred_region
      _
    $region21: #{net_forward.1} parent=1 // pred_fallthru
      _
    %v22 = vld [vmem:[%s0] sm:$0xff]
    %v23 = vpack.c.bf16 %v22, %v22
    %v24 = vld [vmem:[%s1] sm:$0xf]
    %v25 = vld [vmem:[%s1 + $0x4] sm:$0xf]
    %v26 = vld [vmem:[%s1 + $0x8] sm:$0xf]
    %v27 = vld [vmem:[%s1 + $0xc] sm:$0xf]
    %v28 = vld [vmem:[%s1 + $0x10] sm:$0xf]
    %v29 = vld [vmem:[%s1 + $0x14] sm:$0xf]
    %v30 = vld [vmem:[%s1 + $0x18] sm:$0xf]
    %v31 = vld [vmem:[%s1 + $0x1c] sm:$0xf]
    %v32 = vld [vmem:[%s2] sm:$0x1]
    %v34 = vlaneseq
    %v35 = vshrl.u32 %v34, 7
    %v36 = vsub.s32 0, %v35
    %v37 = vrot.slane %v32, %v36
    %v47 = vunpack.c.l.b16 %v24
    %v48 = vunpack.c.l.b16 %v25
    %v49 = vunpack.c.l.b16 %v26
    %v50 = vunpack.c.l.b16 %v27
    %v51 = vunpack.c.l.b16 %v28
    %v52 = vunpack.c.l.b16 %v29
    %v53 = vunpack.c.l.b16 %v30
    %v54 = vunpack.c.l.b16 %v31
    %v55 = vpack.c.b16 %v48, %v47
    %v56 = vpack.c.b16 %v50, %v49
    %v57 = vpack.c.b16 %v52, %v51
    %v58 = vpack.c.b16 %v54, %v53
    %vm63 = vcmask 523264
    %v65 = vsel %vm63, %v23, 0
    %67 = vmatprep.subr.bf16.mxu0 0
    %68 = vmatpush1.bf16.msra.mxu0 %v55
    %69 = vmatprep.subr.bf16.mxu0 0
    %70 = vmatpush1.bf16.msra.mxu0 %v56
    %71 = vmatprep.subr.bf16.mxu0 0
    %72 = vmatpush1.bf16.msra.mxu0 %v57
    %73 = vmatprep.subr.bf16.mxu0 0
    %74 = vmatpush1.bf16.msra.mxu0 %v58
    %75 = vmatprep.subr.bf16.mxu0 0
    %76 = vmatpush1.bf16.msra.mxu0 0
    %77 = vmatprep.subr.bf16.mxu0 0
    %78 = vmatpush1.bf16.msra.mxu0 0
    %79 = vmatprep.subr.bf16.mxu0 0
    %80 = vmatpush1.bf16.msra.mxu0 0
    %81 = vmatprep.subr.bf16.mxu0 0
    %82 = vmatpush1.bf16.msra.mxu0 0
    %83 = vmatprep.subr.bf16.mxu0 0
    %84 = vmatpush1.bf16.msra.mxu0 0
    %85 = vmatprep.subr.bf16.mxu0 0
    %86 = vmatpush1.bf16.msra.mxu0 0
    %87 = vmatprep.subr.bf16.mxu0 0
    %88 = vmatpush1.bf16.msra.mxu0 0
    %89 = vmatprep.subr.bf16.mxu0 0
    %90 = vmatpush1.bf16.msra.mxu0 0
    %91 = vmatprep.subr.bf16.mxu0 0
    %92 = vmatpush1.bf16.msra.mxu0 0
    %93 = vmatprep.subr.bf16.mxu0 0
    %94 = vmatpush1.bf16.msra.mxu0 0
    %95 = vmatprep.subr.bf16.mxu0 0
    %96 = vmatpush1.bf16.msra.mxu0 0
    %97 = vmatprep.subr.bf16.mxu0 0
    %98 = vmatpush1.bf16.msra.mxu0 0
    %99 = vmatprep.mubr.bf16.mxu0 0
    %100 = vmatmul.mubr.bf16.gmra.mrb[0].mxu0 %v65
    %v101 = vpop.f32.mrb[0].mxu0
    %v102 = vadd.f32 %v37, %v101
    %v103 = vpop.f32.mrb[0].mxu0
    %v104 = vpop.f32.mrb[0].mxu0
    %v105 = vpop.f32.mrb[0].mxu0
    %106 = vdwg.mxu0
    %v107 = vmax.f32 %v102, 0.0
    %v108 = vpack.c.bf16 %v107, %v107
    %v109 = vld [vmem:[%s3] sm:$0xf]
    %v110 = vld [vmem:[%s3 + $0x4] sm:$0xf]
    %v111 = vld [vmem:[%s3 + $0x8] sm:$0xf]
    %v112 = vld [vmem:[%s3 + $0xc] sm:$0xf]
    %v113 = vld [vmem:[%s3 + $0x10] sm:$0xf]
    %v114 = vld [vmem:[%s3 + $0x14] sm:$0xf]
    %v115 = vld [vmem:[%s3 + $0x18] sm:$0xf]
    %v116 = vld [vmem:[%s3 + $0x1c] sm:$0xf]
    %v117 = vld [vmem:[%s4] sm:$0x1]
    %v119 = vlaneseq
    %v120 = vshrl.u32 %v119, 7
    %v121 = vsub.s32 0, %v120
    %v122 = vrot.slane %v117, %v121
    %v132 = vunpack.c.l.b16 %v109
    %v133 = vunpack.c.l.b16 %v110
    %v134 = vunpack.c.l.b16 %v111
    %v135 = vunpack.c.l.b16 %v112
    %v136 = vunpack.c.l.b16 %v113
    %v137 = vunpack.c.l.b16 %v114
    %v138 = vunpack.c.l.b16 %v115
    %v139 = vunpack.c.l.b16 %v116
    %v140 = vpack.c.b16 %v133, %v132
    %v141 = vpack.c.b16 %v135, %v134
    %v142 = vpack.c.b16 %v137, %v136
    %v143 = vpack.c.b16 %v139, %v138
    %v149 = vsel %vm63, %v108, 0
    %151 = vmatprep.subr.bf16.mxu0 0
    %152 = vmatpush1.bf16.msra.mxu0 %v140
    %153 = vmatprep.subr.bf16.mxu0 0
    %154 = vmatpush1.bf16.msra.mxu0 %v141
    %155 = vmatprep.subr.bf16.mxu0 0
    %156 = vmatpush1.bf16.msra.mxu0 %v142
    %157 = vmatprep.subr.bf16.mxu0 0
    %158 = vmatpush1.bf16.msra.mxu0 %v143
    %159 = vmatprep.subr.bf16.mxu0 0
    %160 = vmatpush1.bf16.msra.mxu0 0
    %161 = vmatprep.subr.bf16.mxu0 0
    %162 = vmatpush1.bf16.msra.mxu0 0
    %163 = vmatprep.subr.bf16.mxu0 0
    %164 = vmatpush1.bf16.msra.mxu0 0
    %165 = vmatprep.subr.bf16.mxu0 0
    %166 = vmatpush1.bf16.msra.mxu0 0
    %167 = vmatprep.subr.bf16.mxu0 0
    %168 = vmatpush1.bf16.msra.mxu0 0
    %169 = vmatprep.subr.bf16.mxu0 0
    %170 = vmatpush1.bf16.msra.mxu0 0
    %171 = vmatprep.subr.bf16.mxu0 0
    %172 = vmatpush1.bf16.msra.mxu0 0
    %173 = vmatprep.subr.bf16.mxu0 0
    %174 = vmatpush1.bf16.msra.mxu0 0
    %175 = vmatprep.subr.bf16.mxu0 0
    %176 = vmatpush1.bf16.msra.mxu0 0
    %177 = vmatprep.subr.bf16.mxu0 0
    %178 = vmatpush1.bf16.msra.mxu0 0
    %179 = vmatprep.subr.bf16.mxu0 0
    %180 = vmatpush1.bf16.msra.mxu0 0
    %181 = vmatprep.subr.bf16.mxu0 0
    %182 = vmatpush1.bf16.msra.mxu0 0
    %183 = vmatprep.mubr.bf16.mxu0 0
    %184 = vmatmul.mubr.bf16.gmra.mrb[0].mxu0 %v149
    %v185 = vpop.f32.mrb[0].mxu0
    %v186 = vadd.f32 %v122, %v185
    %v187 = vpop.f32.mrb[0].mxu0
    %v188 = vpop.f32.mrb[0].mxu0
    %v189 = vpop.f32.mrb[0].mxu0
    %190 = vdwg.mxu0
    %vm191 = vcmask 80896
    %192 = vst.msk [vmem:[#allocation2] sm:$0xff] %vm191, %v186
    // Predicated region
    $region22: #{net_forward.1} parent=1 // pred_check
      _
    $region23: #{net_forward.1} parent=1 // pred_check_branch
      %194 = sbr.rel (0) target = $region25
    $region24: #{net_forward.1} parent=1 // pred_region
      %s196 = ssub.s32 128, 32
      %197 = vsyncadd [#allocation3], %s196
      %s198 = sshll.u32 [#allocation2], 4
      %s199 = int_to_ptr.vmem [resolvable:$true] %s198
      %204 = dma.vmem_to_hbm [thread:$0]  %s199, 32, %s5, [#allocation3], 32, 32, 2
    $region25: #{net_forward.1} parent=1 // pred_fallthru
      _
    // Predicated region
    $region26: #{net_forward.1} parent=1 // pred_check
      _
    $region27: #{net_forward.1} parent=1 // pred_check_branch
      %206 = sbr.rel (0) target = $region29
    $region28: #{net_forward.1} parent=1 // pred_region
      %207 = dma.done [#allocation3], 128
    $region29: #{net_forward.1} parent=1 // pred_fallthru
      _
    %208 = vsyncpa [#allocation3], 1

</llo_original>
